<compile_context>
chip_gen: v5e
topology: v5e:2x2
jax: 0.10.0
libtpu: 0.0.40
codegen_flags: <defaults>
</compile_context>

<pallas_src>
import jax
import jax.numpy as jnp
from jax.experimental import pallas as pl
from jax.experimental.pallas import tpu as pltpu

# ------------------------- module hyper-parameters -------------------------
NUM_HEADS = 4
HIDDEN_SIZE = 128
OUTPUT_SIZE = 128
MINI_BATCH_SIZE = 8
ROPE_THETA = 10000.0
HEAD_DIM = HIDDEN_SIZE // NUM_HEADS
TTT_BASE_LR = 1.0
LR_SLAB = 128          # lane-dense width of the ttt-lr gate column slab (H=4 padded)


# ----------------------------- Pallas kernel -------------------------------
def _fused_kernel(x_ref, w_ref, blr_ref, q_ref, k_ref, v_ref, o_ref, lr_ref):
    """Fused q/k/v/o projections + ttt-lr gate for one M-tile of rows.

    x_ref:   (TM, C)            row tile of flattened hidden_states
    w_ref:   (C, 3C+O+128)      [wq^T | wk^T | wv^T | wo^T | wlr^T zero-padded]
    blr_ref: (1, 128)           ttt-lr bias, zero-padded to 128 lanes
    q/k/v_ref: (TM, C)          lane-dense (128-lane) outputs, written directly by MXU dots
    o_ref:   (TM, O)
    lr_ref:  (TM, 128)          lane-dense per-token ttt_lr gate slab (cols [:4] real)
    """
    x = x_ref[...]
    C = q_ref.shape[-1]
    O = o_ref.shape[-1]

    # Slab-wise MXU dots writing straight into each output ref — no (TM, 5C)
    # VMEM-staged intermediate, no extra pass on the vector-store slot.
    q_ref[...] = jnp.dot(x, w_ref[:, 0 * C:1 * C], preferred_element_type=jnp.float32)
    k_ref[...] = jnp.dot(x, w_ref[:, 1 * C:2 * C], preferred_element_type=jnp.float32)
    v_ref[...] = jnp.dot(x, w_ref[:, 2 * C:3 * C], preferred_element_type=jnp.float32)
    o_ref[...] = jnp.dot(x, w_ref[:, 3 * C:3 * C + O], preferred_element_type=jnp.float32)

    # ttt-lr gate: lane-dense 128-wide slab (only the first NUM_HEADS columns are
    # real; padded columns are sliced away in the wrapper).  sigmoid -> EUP slot.
    s = jnp.dot(x, w_ref[:, 3 * C + O:3 * C + O + LR_SLAB],
                preferred_element_type=jnp.float32) + blr_ref[...]
    lr_ref[...] = (TTT_BASE_LR / HEAD_DIM) * jax.nn.sigmoid(s)


def _pick_row_tile(M):
    """Largest row tile (capped at 1024 to stay under v5e's 16 MiB default scoped
    VMEM with double buffering) that still leaves >=2 grid steps so
    ("parallel",) can shard row tiles across both TensorCores on v7x.
    Awkward M is handled by a padded/masked last tile via pl.cdiv, never by
    collapsing to a tiny divisor."""
    for tm in (1024, 512, 256, 128, 64, 32, 16, 8):
        if M >= 2 * tm:
            return tm
    return 8


def fused_qkvo_eta(x2d, w_fused, b_lr_pad, out_size):
    M, C = x2d.shape
    NW = w_fused.shape[1]
    O = out_size
    tm = _pick_row_tile(M)
    grid = (pl.cdiv(M, tm),)

    return pl.pallas_call(
        _fused_kernel,
        grid=grid,
        in_specs=[
            pl.BlockSpec((tm, C), lambda i: (i, 0)),
            pl.BlockSpec((C, NW), lambda i: (0, 0)),
            pl.BlockSpec((1, LR_SLAB), lambda i: (0, 0)),
        ],
        out_specs=[
            pl.BlockSpec((tm, C), lambda i: (i, 0)),
            pl.BlockSpec((tm, C), lambda i: (i, 0)),
            pl.BlockSpec((tm, C), lambda i: (i, 0)),
            pl.BlockSpec((tm, O), lambda i: (i, 0)),
            pl.BlockSpec((tm, LR_SLAB), lambda i: (i, 0)),
        ],
        out_shape=[
            jax.ShapeDtypeStruct((M, C), jnp.float32),
            jax.ShapeDtypeStruct((M, C), jnp.float32),
            jax.ShapeDtypeStruct((M, C), jnp.float32),
            jax.ShapeDtypeStruct((M, O), jnp.float32),
            jax.ShapeDtypeStruct((M, LR_SLAB), jnp.float32),
        ],
        compiler_params=pltpu.CompilerParams(
            dimension_semantics=("parallel",)),   # row tiles shard across TCs (v7x)
    )(x2d, w_fused, b_lr_pad)


# --------------------------- one-time param prep -----------------------------
def prepare_params(params):
    """Hoisted out of the jitted forward: builds the fused (C, 3C+O+128) weight
    and the padded ttt-lr bias once, so pallas_call operands stay stable."""
    C, H = HIDDEN_SIZE, NUM_HEADS
    w_lr_t = params['ttt_lr_weight'].reshape(H, C).T                       # (C, H)
    w_lr_pad = jnp.zeros((C, LR_SLAB), jnp.float32).at[:, :H].set(w_lr_t)  # (C, 128)
    b_lr_pad = jnp.zeros((1, LR_SLAB), jnp.float32).at[0, :H].set(
        params['ttt_lr_bias'].reshape(H))
    w_fused = jnp.concatenate(
        [params['wq'].T, params['wk'].T, params['wv'].T, params['wo'].T, w_lr_pad],
        axis=1)                                                            # (C, 640)
    prepped = dict(params)
    prepped['w_fused'] = w_fused
    prepped['b_lr_pad'] = b_lr_pad
    return prepped


# ------------------------------ forward glue --------------------------------
def ttt_base_forward(prepped, hidden_states, position_ids=None):
    B, L, C = hidden_states.shape
    mb = MINI_BATCH_SIZE
    H = NUM_HEADS
    # TODO(synk): remainder path (L % mini_batch_size != 0) is omitted — it only
    # feeds the abstract ttt() call in the base class.
    assert L % mb == 0
    n = L // mb
    M = B * L

    x2d = hidden_states.reshape(M, C)                          # free reshape
    q2d, k2d, v2d, o2d, lr_slab = fused_qkvo_eta(
        x2d, prepped['w_fused'], prepped['b_lr_pad'], OUTPUT_SIZE)

    out = o2d.reshape(B, L, OUTPUT_SIZE)

    # XQ/XK/XV kept in the kernel's native (B, L, H, head_dim) layout — a FREE
    # reshape, no extra HBM transpose pass. The head-major (B,H,n,mb,hd) view the
    # (abstract) ttt() consumer expects is a cheap deferred transpose (see
    # to_head_major), applied only where genuinely needed.
    XQ = q2d.reshape(B, L, H, HEAD_DIM)
    XK = k2d.reshape(B, L, H, HEAD_DIM)
    XV = v2d.reshape(B, L, H, HEAD_DIM)

    # eta terms — assembled lazily from the kernel's per-token gate (tiny arrays).
    lr2d = lr_slab[:, :H]                                      # (M, H) real columns
    ttt_lr_eta = lr2d.reshape(B, n, mb, H).transpose(0, 3, 1, 2)[:, :, :, None, :]
    tok = jnp.maximum(prepped['token_idx'] + prepped['learnable_token_idx'], 0.0)
    token_eta = jnp.broadcast_to(tok.reshape(1, 1, 1, mb, 1), (B, H, n, mb, 1))
    eta = token_eta * ttt_lr_eta                               # (B,H,n,mb,mb)

    # TODO(synk): TTTBase.ttt() is abstract (raises NotImplementedError); the inner
    # TTT update + post_norm on its output cannot be implemented.  The base
    # forward's actual return value is o_proj(hidden_states) == `out`.
    aux = dict(XQ=XQ, XK=XK, XV=XV,
               eta=eta, token_eta=token_eta, ttt_lr_eta=ttt_lr_eta)
    return out, aux


def to_head_major(x_blhd, mini_batch):
    """(B, L, H, hd) -> (B, H, n, mb, hd): the view the spec's ttt() would consume."""
    B, L, H, D = x_blhd.shape
    n = L // mini_batch
    return x_blhd.transpose(0, 2, 1, 3).reshape(B, H, n, mini_batch, D)


# ------------------------------ params / reference ---------------------------
def init_params(key):
    ks = jax.random.split(key, 5)
    scale = 0.02
    params = {
        'wq': scale * jax.random.normal(ks[0], (HIDDEN_SIZE, HIDDEN_SIZE), jnp.float32),
        'wk': scale * jax.random.normal(ks[1], (HIDDEN_SIZE, HIDDEN_SIZE), jnp.float32),
        'wv': scale * jax.random.normal(ks[2], (HIDDEN_SIZE, HIDDEN_SIZE), jnp.float32),
        'wo': scale * jax.random.normal(ks[3], (OUTPUT_SIZE, HIDDEN_SIZE), jnp.float32),
        'ttt_lr_weight': 0.02 * jax.random.normal(ks[4], (NUM_HEADS, 1, HIDDEN_SIZE), jnp.float32),
        'ttt_lr_bias': jnp.zeros((NUM_HEADS, 1), jnp.float32),
        'learnable_token_idx': jnp.zeros((MINI_BATCH_SIZE,), jnp.float32),
        'token_idx': 1.0 / jnp.arange(1, MINI_BATCH_SIZE + 1, dtype=jnp.float32),
        # Present in the module but unreachable in the base forward path:
        'ttt_norm_weight': jnp.ones((NUM_HEADS, HEAD_DIM), jnp.float32),
        'ttt_norm_bias': jnp.zeros((NUM_HEADS, HEAD_DIM), jnp.float32),
        'post_norm_weight': jnp.ones((HIDDEN_SIZE,), jnp.float32),
        'post_norm_bias': jnp.zeros((HIDDEN_SIZE,), jnp.float32),
    }
    return params


def reference_forward(params, x):
    """Pure-jnp mirror of the reachable part of TTTBase.forward (spec layouts)."""
    B, L, C = x.shape
    mb = MINI_BATCH_SIZE
    n = L // mb
    out = x @ params['wo'].T

    def split_heads(y):
        y = y.reshape(B, L, NUM_HEADS, HEAD_DIM).transpose(0, 2, 1, 3)
        return y.reshape(B, NUM_HEADS, n, mb, HEAD_DIM)

    XQ = split_heads(x @ params['wq'].T)
    XK = split_heads(x @ params['wk'].T)
    XV = split_heads(x @ params['wv'].T)

    Xr = x.reshape(B, n, mb, C)
    ttt_lr = jnp.einsum('bnkc,hdc->bhnkd', Xr, params['ttt_lr_weight']) \
        + params['ttt_lr_bias'].reshape(1, -1, 1, 1, 1)
    ttt_lr = jax.nn.sigmoid(ttt_lr)
    ttt_lr = jnp.transpose(ttt_lr, (0, 1, 2, 4, 3))
    ttt_lr_eta = TTT_BASE_LR * ttt_lr / HEAD_DIM
    tok = jnp.maximum(params['token_idx'] + params['learnable_token_idx'], 0.0)
    token_eta = jnp.broadcast_to(tok.reshape(1, 1, 1, mb, 1),
                                 (B, NUM_HEADS, n, mb, 1))
    eta = token_eta * ttt_lr_eta
    aux = dict(XQ=XQ, XK=XK, XV=XV,
               eta=eta, token_eta=token_eta, ttt_lr_eta=ttt_lr_eta)
    return out, aux


# ----------------------------------- main ------------------------------------
if __name__ == "__main__":
    key = jax.random.PRNGKey(0)
    pkey, xkey = jax.random.split(key)
    params = init_params(pkey)
    prepped = prepare_params(params)          # one-time weight fusion (hoisted)

    B, L = 2, 16
    hidden_states = jax.random.normal(xkey, (B, L, HIDDEN_SIZE), jnp.float32)
    position_ids = jnp.broadcast_to(jnp.arange(L)[None, :], (B, L))

    fwd = jax.jit(ttt_base_forward)
    out, aux = fwd(prepped, hidden_states, position_ids)
    jax.block_until_ready(out)
    jax.block_until_ready(aux)

    ref_out, ref_aux = reference_forward(params, hidden_states)
    assert out.shape == (B, L, OUTPUT_SIZE)
    assert bool(jnp.allclose(out, ref_out, atol=1e-4, rtol=1e-4))

    mb = MINI_BATCH_SIZE
    assert bool(jnp.allclose(to_head_major(aux['XQ'], mb), ref_aux['XQ'],
                             atol=1e-4, rtol=1e-4)), 'XQ'
    assert bool(jnp.allclose(to_head_major(aux['XK'], mb), ref_aux['XK'],
                             atol=1e-4, rtol=1e-4)), 'XK'
    assert bool(jnp.allclose(to_head_major(aux['XV'], mb), ref_aux['XV'],
                             atol=1e-4, rtol=1e-4)), 'XV'
    for name in ('eta', 'token_eta', 'ttt_lr_eta'):
        assert bool(jnp.allclose(aux[name], ref_aux[name], atol=1e-4, rtol=1e-4)), name

    print("KERNEL_OK")
</pallas_src>

<mosaic_0001>
module attributes {stable_mosaic.version = 11 : i64} {
  func.func @_fused_kernel(%arg0: i32, %arg1: memref<16x128xf32, #tpu.memory_space<vmem>>, %arg2: memref<128x640xf32, #tpu.memory_space<vmem>>, %arg3: memref<1x128xf32, #tpu.memory_space<vmem>>, %arg4: memref<16x128xf32, #tpu.memory_space<vmem>>, %arg5: memref<16x128xf32, #tpu.memory_space<vmem>>, %arg6: memref<16x128xf32, #tpu.memory_space<vmem>>, %arg7: memref<16x128xf32, #tpu.memory_space<vmem>>, %arg8: memref<16x128xf32, #tpu.memory_space<vmem>>) attributes {dimension_semantics = [#tpu.dimension_semantics<parallel>], iteration_bounds = array<i64: 2>, scalar_prefetch = 0 : i64, scratch_operands = 0 : i64, tpu.core_type = #tpu.core_type<tc>, window_params = [{transform_indices = @transform_0, window_bounds = array<i64: 16, 128>}, {pipeline_mode = #tpu.pipeline_mode<synchronous>, transform_indices = @transform_1, window_bounds = array<i64: 128, 640>}, {pipeline_mode = #tpu.pipeline_mode<synchronous>, transform_indices = @transform_2, window_bounds = array<i64: 1, 128>}, {transform_indices = @transform_3, window_bounds = array<i64: 16, 128>}, {transform_indices = @transform_4, window_bounds = array<i64: 16, 128>}, {transform_indices = @transform_5, window_bounds = array<i64: 16, 128>}, {transform_indices = @transform_6, window_bounds = array<i64: 16, 128>}, {transform_indices = @transform_7, window_bounds = array<i64: 16, 128>}]} {
    %c0 = arith.constant 0 : index
    %c0_0 = arith.constant 0 : index
    %0 = vector.load %arg1[%c0, %c0_0] : memref<16x128xf32, #tpu.memory_space<vmem>>, vector<16x128xf32>
    %c0_1 = arith.constant 0 : index
    %c0_2 = arith.constant 0 : index
    %1 = vector.load %arg2[%c0_1, %c0_2] : memref<128x640xf32, #tpu.memory_space<vmem>>, vector<128x128xf32>
    %cst = arith.constant dense<0.000000e+00> : vector<16x128xf32>
    %2 = tpu.matmul %0, %1, %cst {dimension_numbers = #tpu.dot_dimension_numbers<[1], [0], [0], [1], [0, 0, 1, 1], [], []>} : vector<16x128xf32>, vector<128x128xf32>, vector<16x128xf32> -> vector<16x128xf32>
    %c0_3 = arith.constant 0 : index
    %c0_4 = arith.constant 0 : index
    %3 = vector.load %arg4[%c0_3, %c0_4] : memref<16x128xf32, #tpu.memory_space<vmem>>, vector<16x128xf32>
    tpu.vector_store %arg4[%c0_3, %c0_4], %2 {strides = array<i32>} : memref<16x128xf32, #tpu.memory_space<vmem>>, vector<16x128xf32>,
    %c0_5 = arith.constant 0 : index
    %c128 = arith.constant 128 : index
    %4 = vector.load %arg2[%c0_5, %c128] : memref<128x640xf32, #tpu.memory_space<vmem>>, vector<128x128xf32>
    %cst_6 = arith.constant dense<0.000000e+00> : vector<16x128xf32>
    %5 = tpu.matmul %0, %4, %cst_6 {dimension_numbers = #tpu.dot_dimension_numbers<[1], [0], [0], [1], [0, 0, 1, 1], [], []>} : vector<16x128xf32>, vector<128x128xf32>, vector<16x128xf32> -> vector<16x128xf32>
    %c0_7 = arith.constant 0 : index
    %c0_8 = arith.constant 0 : index
    %6 = vector.load %arg5[%c0_7, %c0_8] : memref<16x128xf32, #tpu.memory_space<vmem>>, vector<16x128xf32>
    tpu.vector_store %arg5[%c0_7, %c0_8], %5 {strides = array<i32>} : memref<16x128xf32, #tpu.memory_space<vmem>>, vector<16x128xf32>,
    %c0_9 = arith.constant 0 : index
    %c256 = arith.constant 256 : index
    %7 = vector.load %arg2[%c0_9, %c256] : memref<128x640xf32, #tpu.memory_space<vmem>>, vector<128x128xf32>
    %cst_10 = arith.constant dense<0.000000e+00> : vector<16x128xf32>
    %8 = tpu.matmul %0, %7, %cst_10 {dimension_numbers = #tpu.dot_dimension_numbers<[1], [0], [0], [1], [0, 0, 1, 1], [], []>} : vector<16x128xf32>, vector<128x128xf32>, vector<16x128xf32> -> vector<16x128xf32>
    %c0_11 = arith.constant 0 : index
    %c0_12 = arith.constant 0 : index
    %9 = vector.load %arg6[%c0_11, %c0_12] : memref<16x128xf32, #tpu.memory_space<vmem>>, vector<16x128xf32>
    tpu.vector_store %arg6[%c0_11, %c0_12], %8 {strides = array<i32>} : memref<16x128xf32, #tpu.memory_space<vmem>>, vector<16x128xf32>,
    %c0_13 = arith.constant 0 : index
    %c384 = arith.constant 384 : index
    %10 = vector.load %arg2[%c0_13, %c384] : memref<128x640xf32, #tpu.memory_space<vmem>>, vector<128x128xf32>
    %cst_14 = arith.constant dense<0.000000e+00> : vector<16x128xf32>
    %11 = tpu.matmul %0, %10, %cst_14 {dimension_numbers = #tpu.dot_dimension_numbers<[1], [0], [0], [1], [0, 0, 1, 1], [], []>} : vector<16x128xf32>, vector<128x128xf32>, vector<16x128xf32> -> vector<16x128xf32>
    %c0_15 = arith.constant 0 : index
    %c0_16 = arith.constant 0 : index
    %12 = vector.load %arg7[%c0_15, %c0_16] : memref<16x128xf32, #tpu.memory_space<vmem>>, vector<16x128xf32>
    tpu.vector_store %arg7[%c0_15, %c0_16], %11 {strides = array<i32>} : memref<16x128xf32, #tpu.memory_space<vmem>>, vector<16x128xf32>,
    %c0_17 = arith.constant 0 : index
    %c512 = arith.constant 512 : index
    %13 = vector.load %arg2[%c0_17, %c512] : memref<128x640xf32, #tpu.memory_space<vmem>>, vector<128x128xf32>
    %cst_18 = arith.constant dense<0.000000e+00> : vector<16x128xf32>
    %14 = tpu.matmul %0, %13, %cst_18 {dimension_numbers = #tpu.dot_dimension_numbers<[1], [0], [0], [1], [0, 0, 1, 1], [], []>} : vector<16x128xf32>, vector<128x128xf32>, vector<16x128xf32> -> vector<16x128xf32>
    %c0_19 = arith.constant 0 : index
    %c0_20 = arith.constant 0 : index
    %15 = vector.load %arg3[%c0_19, %c0_20] : memref<1x128xf32, #tpu.memory_space<vmem>>, vector<1x128xf32>
    %16 = vector.broadcast %15 : vector<1x128xf32> to vector<16x128xf32>
    %17 = arith.addf %14, %16 : vector<16x128xf32>
    %18 = arith.negf %17 : vector<16x128xf32>
    %19 = math.exp %18 : vector<16x128xf32>
    %cst_21 = arith.constant 1.000000e+00 : f32
    %20 = vector.broadcast %cst_21 : f32 to vector<16x128xf32>
    %21 = arith.addf %20, %19 : vector<16x128xf32>
    %22 = arith.divf %20, %21 : vector<16x128xf32>
    %cst_22 = arith.constant 3.125000e-02 : f32
    %23 = vector.broadcast %cst_22 : f32 to vector<16x128xf32>
    %24 = arith.mulf %23, %22 : vector<16x128xf32>
    %c0_23 = arith.constant 0 : index
    %c0_24 = arith.constant 0 : index
    %25 = vector.load %arg8[%c0_23, %c0_24] : memref<16x128xf32, #tpu.memory_space<vmem>>, vector<16x128xf32>
    tpu.vector_store %arg8[%c0_23, %c0_24], %24 {strides = array<i32>} : memref<16x128xf32, #tpu.memory_space<vmem>>, vector<16x128xf32>,
    return
  }
  func.func @transform_0(%arg0: i32) -> (i32, i32) {
    %c0_i32 = arith.constant 0 : i32
    %c0_i32_0 = arith.constant 0 : i32
    return %arg0, %c0_i32 : i32, i32
  }
  func.func @transform_1(%arg0: i32) -> (i32, i32) {
    %c0_i32 = arith.constant 0 : i32
    %c0_i32_0 = arith.constant 0 : i32
    %c0_i32_1 = arith.constant 0 : i32
    return %c0_i32, %c0_i32_0 : i32, i32
  }
  func.func @transform_2(%arg0: i32) -> (i32, i32) {
    %c0_i32 = arith.constant 0 : i32
    %c0_i32_0 = arith.constant 0 : i32
    %c0_i32_1 = arith.constant 0 : i32
    return %c0_i32, %c0_i32_0 : i32, i32
  }
  func.func @transform_3(%arg0: i32) -> (i32, i32) {
    %c0_i32 = arith.constant 0 : i32
    %c0_i32_0 = arith.constant 0 : i32
    return %arg0, %c0_i32 : i32, i32
  }
  func.func @transform_4(%arg0: i32) -> (i32, i32) {
    %c0_i32 = arith.constant 0 : i32
    %c0_i32_0 = arith.constant 0 : i32
    return %arg0, %c0_i32 : i32, i32
  }
  func.func @transform_5(%arg0: i32) -> (i32, i32) {
    %c0_i32 = arith.constant 0 : i32
    %c0_i32_0 = arith.constant 0 : i32
    return %arg0, %c0_i32 : i32, i32
  }
  func.func @transform_6(%arg0: i32) -> (i32, i32) {
    %c0_i32 = arith.constant 0 : i32
    %c0_i32_0 = arith.constant 0 : i32
    return %arg0, %c0_i32 : i32, i32
  }
  func.func @transform_7(%arg0: i32) -> (i32, i32) {
    %c0_i32 = arith.constant 0 : i32
    %c0_i32_0 = arith.constant 0 : i32
    return %arg0, %c0_i32 : i32, i32
  }
}

</mosaic_0001>

<llo_original>
// kernel: ttt_base_forward.1
$region0: #{ttt_base_forward.1}
  #allocation0 [shape = 'u32[]', space=smem, size = 0x4, offset = 0x4, fixed_abs, tag = 'smem constant byte address 0x4 - core index']
  #allocation1 [shape = 'u32[72,128]{1,0:T(1,128)}', space=vmem, size = 0x9000, scoped, tag = 'internal scratch']
  %s0 = inlined_call_operand.hbm [shape: f32[32,128], index: 0, kind: input, shape index: {}]
  %s1 = inlined_call_operand.hbm [shape: f32[128,640], index: 1, kind: input, shape index: {}]
  %s2 = inlined_call_operand.vmem [shape: f32[1,128], index: 2, kind: input, shape index: {}]
  %s3 = inlined_call_operand.vmem [shape: f32[32,128], index: 3, kind: output, shape index: {0}]
  %s4 = inlined_call_operand.vmem [shape: f32[32,128], index: 4, kind: output, shape index: {1}]
  %s5 = inlined_call_operand.vmem [shape: f32[32,128], index: 5, kind: output, shape index: {2}]
  %s6 = inlined_call_operand.hbm [shape: f32[32,128], index: 6, kind: output, shape index: {3}]
  %s7 = inlined_call_operand.vmem [shape: f32[32,128], index: 7, kind: output, shape index: {4}]
  %8 = xla_tuple %s3, %s4, %s5, %s6, %s7
  %s9 = sld [smem:[#allocation0]]
  $region85: #{ttt_base_forward.1} parent=0
    _
  %s11 = ssub.s32 1, %s9
  %s12 = scalar_select 0, %s11, %s9
  $region1: #{ttt_base_forward.1} parent=0
    #allocation2 [shape = 'u8[16384]{0}', space=vmem, size = 0x4000, scoped, tag = 'input window, operand 0']
    #allocation3 [shape = 's32[2]{0}', space=sflag, size = 0x8, scoped, tag = 'scoped memory for ttt_base_forward.1']
    #allocation4 [shape = 's32[2]{0}', space=sflag, size = 0x8, scoped, tag = 'scoped memory for ttt_base_forward.1']
    #allocation5 [shape = 'u8[327680]{0}', space=vmem, size = 0x50000, scoped, tag = 'input window, operand 1, single buffered']
    #allocation6 [shape = 's32[1]{0}', space=sflag, size = 0x4, scoped, tag = 'scoped memory for ttt_base_forward.1']
    #allocation7 [shape = 'u8[16384]{0}', space=vmem, size = 0x4000, scoped, tag = 'output window, operand 3']
    %13 = vsyncpa [#allocation3], 0
    %s14 = scalar_lea.sflag [#allocation3], 1
    %15 = vsyncpa %s14, 0
    %16 = vsyncpa [#allocation6], 0
    %17 = vsyncpa [#allocation4], 0
    %s18 = scalar_lea.sflag [#allocation4], 1
    %19 = vsyncpa %s18, 0
    loop: start=0, step=1, limit=4
    $region2: #{ttt_base_forward.1} parent=1 // loop_pre_header
      _
    $region3: #{ttt_base_forward.1} parent=1 // loop_header
      %s21 = sphi 0, %s25
      %p22 = scmp.ge.s32.totalorder %s21, 4
      %s31 = sphi 0, %s33
      %s34 = sphi 0, %s31
      %s35 = sphi 0, %s34
      %s51 = sphi 0, %s35
      %s55 = sphi 0, %s55
      %s57 = sphi 0, %s55
      %s58 = sphi 0, %s57
      %s72 = sphi 0, %s58
      %s76 = sphi 0, %s76
      %s78 = sphi 0, %s76
      %s79 = sphi 0, %s78
      %s93 = sphi 0, %s79
      %s99 = sphi 0, %s101
      %s102 = sphi 0, %s99
      %s103 = sphi 0, %s102
      %s119 = sphi 0, %s103
      %s125 = sphi 0, %s127
      %s128 = sphi 0, %s125
      %s129 = sphi 0, %s128
      %s145 = sphi 0, %s129
      %s151 = sphi 0, %s153
      %s154 = sphi 0, %s151
      %s155 = sphi 0, %s154
      %s171 = sphi 0, %s155
      %s177 = sphi 0, %s179
      %s180 = sphi 0, %s177
      %s181 = sphi 0, %s180
      %s197 = sphi 0, %s181
      %s203 = sphi 0, %s205
      %s206 = sphi 0, %s203
      %s207 = sphi 0, %s206
      %s223 = sphi 0, %s207
    $region4: #{ttt_base_forward.1} parent=1 // loop_header_branch
      %24 = sbr.rel (%p22) target = $region8
    $region5: #{ttt_base_forward.1} parent=1 // loop_body
      %s26 = ssub.s32 %s21, 1
      %s27 = ssub.s32 %s21, 2
      %s28 = sadd.s32 %s21, 1
      %s29 = ssub.s32 %s21, %s28
      %p30 = scmp.eq.s32.totalorder %s29, 0
      %s32 = sadd.s32 %s31, 1
      %s33 = scalar_select %p30, %s31, %s32
      %p36 = pneg %p30
      %p37 = scmp.eq.s32.totalorder %s21, 1
      %p38 = por %p36, %p37
      %p39 = scmp.ne.s32.totalorder %s31, %s34
      %p40 = scmp.eq.s32.totalorder %s21, 0
      %p41 = por %p39, %p40
      %p42 = scmp.ne.s32.totalorder %s31, %s34
      %p43 = scmp.eq.s32.totalorder %s26, 1
      %p44 = por %p42, %p43
      %p45 = scmp.ne.s32.totalorder %s34, %s35
      %p46 = scmp.eq.s32.totalorder %s26, 0
      %p47 = por %p45, %p46
      %p48 = scmp.ne.s32.totalorder %s34, %s35
      %p49 = scmp.eq.s32.totalorder %s27, 1
      %p50 = por %p48, %p49
      %p52 = scmp.ne.s32.totalorder %s35, %s51
      %p53 = scmp.eq.s32.totalorder %s27, 0
      %p54 = por %p52, %p53
      %s56 = sadd.s32 %s55, 1
      %p59 = scmp.eq.s32.totalorder %s21, 1
      %p60 = scmp.ne.s32.totalorder %s55, %s57
      %p61 = scmp.eq.s32.totalorder %s21, 0
      %p62 = por %p60, %p61
      %p63 = scmp.ne.s32.totalorder %s55, %s57
      %p64 = scmp.eq.s32.totalorder %s26, 1
      %p65 = por %p63, %p64
      %p66 = scmp.ne.s32.totalorder %s57, %s58
      %p67 = scmp.eq.s32.totalorder %s26, 0
      %p68 = por %p66, %p67
      %p69 = scmp.ne.s32.totalorder %s57, %s58
      %p70 = scmp.eq.s32.totalorder %s27, 1
      %p71 = por %p69, %p70
      %p73 = scmp.ne.s32.totalorder %s58, %s72
      %p74 = scmp.eq.s32.totalorder %s27, 0
      %p75 = por %p73, %p74
      %s77 = sadd.s32 %s76, 1
      %p80 = scmp.eq.s32.totalorder %s21, 1
      %p81 = scmp.ne.s32.totalorder %s76, %s78
      %p82 = scmp.eq.s32.totalorder %s21, 0
      %p83 = por %p81, %p82
      %p84 = scmp.ne.s32.totalorder %s76, %s78
      %p85 = scmp.eq.s32.totalorder %s26, 1
      %p86 = por %p84, %p85
      %p87 = scmp.ne.s32.totalorder %s78, %s79
      %p88 = scmp.eq.s32.totalorder %s26, 0
      %p89 = por %p87, %p88
      %p90 = scmp.ne.s32.totalorder %s78, %s79
      %p91 = scmp.eq.s32.totalorder %s27, 1
      %p92 = por %p90, %p91
      %p94 = scmp.ne.s32.totalorder %s79, %s93
      %p95 = scmp.eq.s32.totalorder %s27, 0
      %p96 = por %p94, %p95
      %s97 = ssub.s32 %s21, %s28
      %p98 = scmp.eq.s32.totalorder %s97, 0
      %s100 = sadd.s32 %s99, 1
      %s101 = scalar_select %p98, %s99, %s100
      %p104 = pneg %p98
      %p105 = scmp.eq.s32.totalorder %s21, 1
      %p106 = por %p104, %p105
      %p107 = scmp.ne.s32.totalorder %s99, %s102
      %p108 = scmp.eq.s32.totalorder %s21, 0
      %p109 = por %p107, %p108
      %p110 = scmp.ne.s32.totalorder %s99, %s102
      %p111 = scmp.eq.s32.totalorder %s26, 1
      %p112 = por %p110, %p111
      %p113 = scmp.ne.s32.totalorder %s102, %s103
      %p114 = scmp.eq.s32.totalorder %s26, 0
      %p115 = por %p113, %p114
      %p116 = scmp.ne.s32.totalorder %s102, %s103
      %p117 = scmp.eq.s32.totalorder %s27, 1
      %p118 = por %p116, %p117
      %p120 = scmp.ne.s32.totalorder %s103, %s119
      %p121 = scmp.eq.s32.totalorder %s27, 0
      %p122 = por %p120, %p121
      %s123 = ssub.s32 %s21, %s28
      %p124 = scmp.eq.s32.totalorder %s123, 0
      %s126 = sadd.s32 %s125, 1
      %s127 = scalar_select %p124, %s125, %s126
      %p130 = pneg %p124
      %p131 = scmp.eq.s32.totalorder %s21, 1
      %p132 = por %p130, %p131
      %p133 = scmp.ne.s32.totalorder %s125, %s128
      %p134 = scmp.eq.s32.totalorder %s21, 0
      %p135 = por %p133, %p134
      %p136 = scmp.ne.s32.totalorder %s125, %s128
      %p137 = scmp.eq.s32.totalorder %s26, 1
      %p138 = por %p136, %p137
      %p139 = scmp.ne.s32.totalorder %s128, %s129
      %p140 = scmp.eq.s32.totalorder %s26, 0
      %p141 = por %p139, %p140
      %p142 = scmp.ne.s32.totalorder %s128, %s129
      %p143 = scmp.eq.s32.totalorder %s27, 1
      %p144 = por %p142, %p143
      %p146 = scmp.ne.s32.totalorder %s129, %s145
      %p147 = scmp.eq.s32.totalorder %s27, 0
      %p148 = por %p146, %p147
      %s149 = ssub.s32 %s21, %s28
      %p150 = scmp.eq.s32.totalorder %s149, 0
      %s152 = sadd.s32 %s151, 1
      %s153 = scalar_select %p150, %s151, %s152
      %p156 = pneg %p150
      %p157 = scmp.eq.s32.totalorder %s21, 1
      %p158 = por %p156, %p157
      %p159 = scmp.ne.s32.totalorder %s151, %s154
      %p160 = scmp.eq.s32.totalorder %s21, 0
      %p161 = por %p159, %p160
      %p162 = scmp.ne.s32.totalorder %s151, %s154
      %p163 = scmp.eq.s32.totalorder %s26, 1
      %p164 = por %p162, %p163
      %p165 = scmp.ne.s32.totalorder %s154, %s155
      %p166 = scmp.eq.s32.totalorder %s26, 0
      %p167 = por %p165, %p166
      %p168 = scmp.ne.s32.totalorder %s154, %s155
      %p169 = scmp.eq.s32.totalorder %s27, 1
      %p170 = por %p168, %p169
      %p172 = scmp.ne.s32.totalorder %s155, %s171
      %p173 = scmp.eq.s32.totalorder %s27, 0
      %p174 = por %p172, %p173
      %s175 = ssub.s32 %s21, %s28
      %p176 = scmp.eq.s32.totalorder %s175, 0
      %s178 = sadd.s32 %s177, 1
      %s179 = scalar_select %p176, %s177, %s178
      %p182 = pneg %p176
      %p183 = scmp.eq.s32.totalorder %s21, 1
      %p184 = por %p182, %p183
      %p185 = scmp.ne.s32.totalorder %s177, %s180
      %p186 = scmp.eq.s32.totalorder %s21, 0
      %p187 = por %p185, %p186
      %p188 = scmp.ne.s32.totalorder %s177, %s180
      %p189 = scmp.eq.s32.totalorder %s26, 1
      %p190 = por %p188, %p189
      %p191 = scmp.ne.s32.totalorder %s180, %s181
      %p192 = scmp.eq.s32.totalorder %s26, 0
      %p193 = por %p191, %p192
      %p194 = scmp.ne.s32.totalorder %s180, %s181
      %p195 = scmp.eq.s32.totalorder %s27, 1
      %p196 = por %p194, %p195
      %p198 = scmp.ne.s32.totalorder %s181, %s197
      %p199 = scmp.eq.s32.totalorder %s27, 0
      %p200 = por %p198, %p199
      %s201 = ssub.s32 %s21, %s28
      %p202 = scmp.eq.s32.totalorder %s201, 0
      %s204 = sadd.s32 %s203, 1
      %s205 = scalar_select %p202, %s203, %s204
      %p208 = pneg %p202
      %p209 = scmp.eq.s32.totalorder %s21, 1
      %p210 = por %p208, %p209
      %p211 = scmp.ne.s32.totalorder %s203, %s206
      %p212 = scmp.eq.s32.totalorder %s21, 0
      %p213 = por %p211, %p212
      %p214 = scmp.ne.s32.totalorder %s203, %s206
      %p215 = scmp.eq.s32.totalorder %s26, 1
      %p216 = por %p214, %p215
      %p217 = scmp.ne.s32.totalorder %s206, %s207
      %p218 = scmp.eq.s32.totalorder %s26, 0
      %p219 = por %p217, %p218
      %p220 = scmp.ne.s32.totalorder %s206, %s207
      %p221 = scmp.eq.s32.totalorder %s27, 1
      %p222 = por %p220, %p221
      %p224 = scmp.ne.s32.totalorder %s207, %s223
      %p225 = scmp.eq.s32.totalorder %s27, 0
      %p226 = por %p224, %p225
      %p227 = scmp.le.s32.totalorder 1, %s21
      %p228 = scmp.lt.s32.totalorder %s21, 3
      %p229 = pnand %p227, %p228
      %p230 = pneg %p229
      // Predicated region
      $region9: #{ttt_base_forward.1} parent=5 // pred_check
        _
      $region10: #{ttt_base_forward.1} parent=5 // pred_check_branch
        %232 = sbr.rel (%p229) target = $region12
      $region11: #{ttt_base_forward.1} parent=5 // pred_region
        %s233 = ssub.s32 %s21, 1
        // Predicated region
        $region13: #{ttt_base_forward.1} parent=11 // pred_check
          %p234 = pneg %p68
        $region14: #{ttt_base_forward.1} parent=11 // pred_check_branch
          %236 = sbr.rel (%p234) target = $region16
        $region15: #{ttt_base_forward.1} parent=11 // pred_region
          %238 = vsyncadd [#allocation6], 0
          %s239 = sshll.u32 %s1, 4
          %s240 = int_to_ptr.hbm [resolvable:$true] %s239
          %s241 = sshll.u32 [#allocation5], 4
          %s242 = int_to_ptr.vmem [resolvable:$true] %s241
          %247 = dma.hbm_to_vmem [thread:$0]  %s240, 10240, %s242, [#allocation6], 640, 640, 40
        $region16: #{ttt_base_forward.1} parent=11 // pred_fallthru
          _
        // Predicated region
        $region17: #{ttt_base_forward.1} parent=11 // pred_check
          %p248 = pneg %p89
        $region18: #{ttt_base_forward.1} parent=11 // pred_check_branch
          %250 = sbr.rel (%p248) target = $region20
        $region19: #{ttt_base_forward.1} parent=11 // pred_region
          _
        $region20: #{ttt_base_forward.1} parent=11 // pred_fallthru
          _
      $region12: #{ttt_base_forward.1} parent=5 // pred_fallthru
        _
      %p251 = scmp.lt.s32.totalorder %s21, 2
      // Predicated region
      $region21: #{ttt_base_forward.1} parent=5 // pred_check
        %p252 = pneg %p251
      $region22: #{ttt_base_forward.1} parent=5 // pred_check_branch
        %254 = sbr.rel (%p252) target = $region24
      $region23: #{ttt_base_forward.1} parent=5 // pred_region
        // Predicated region
        $region25: #{ttt_base_forward.1} parent=23 // pred_check
          %p255 = pneg %p41
        $region26: #{ttt_base_forward.1} parent=23 // pred_check_branch
          %257 = sbr.rel (%p255) target = $region28
        $region27: #{ttt_base_forward.1} parent=23 // pred_region
          %s258 = sand.u32 %s31, 1
          %s259 = scalar_lea.sflag [#allocation3], %s258
          %s260 = sand.u32 %s31, 1
          %s261 = smul.addr %s260, 16
          %s262 = scalar_lea.vmem [#allocation2], %s261
          %s263 = smul.u32 2, %s21
          %265 = vsyncadd %s259, 0
          %s266 = smul.addr %s263, 8
          %s267 = scalar_lea.hbm %s0, %s266
          %s268 = sshll.u32 %s267, 4
          %s269 = int_to_ptr.hbm [resolvable:$true] %s268
          %s270 = sshll.u32 %s262, 4
          %s271 = int_to_ptr.vmem [resolvable:$true] %s270
          %276 = dma.hbm_to_vmem [thread:$0]  %s269, 256, %s271, %s259, 128, 128, 8
        $region28: #{ttt_base_forward.1} parent=23 // pred_fallthru
          _
      $region24: #{ttt_base_forward.1} parent=5 // pred_fallthru
        _
      %p277 = scmp.le.s32.totalorder 1, %s21
      %p278 = scmp.lt.s32.totalorder %s21, 3
      %p279 = pnand %p277, %p278
      %p280 = pneg %p279
      // Predicated region
      $region29: #{ttt_base_forward.1} parent=5 // pred_check
        _
      $region30: #{ttt_base_forward.1} parent=5 // pred_check_branch
        %282 = sbr.rel (%p279) target = $region32
      $region31: #{ttt_base_forward.1} parent=5 // pred_region
        %s283 = ssub.s32 %s21, 1
        %s284 = sand.u32 %s34, 1
        %s285 = scalar_lea.sflag [#allocation3], %s284
        %s286 = sand.u32 %s34, 1
        %s287 = smul.addr %s286, 16
        %s288 = scalar_lea.vmem [#allocation2], %s287
        // Predicated region
        $region33: #{ttt_base_forward.1} parent=31 // pred_check
          %p289 = pneg %p47
        $region34: #{ttt_base_forward.1} parent=31 // pred_check_branch
          %291 = sbr.rel (%p289) target = $region36
        $region35: #{ttt_base_forward.1} parent=31 // pred_region
          %293 = dma.done %s285, 256
        $region36: #{ttt_base_forward.1} parent=31 // pred_fallthru
          _
        // Predicated region
        $region37: #{ttt_base_forward.1} parent=31 // pred_check
          %p294 = pneg %p68
        $region38: #{ttt_base_forward.1} parent=31 // pred_check_branch
          %296 = sbr.rel (%p294) target = $region40
        $region39: #{ttt_base_forward.1} parent=31 // pred_region
          %298 = dma.done [#allocation6], 10240
        $region40: #{ttt_base_forward.1} parent=31 // pred_fallthru
          _
        %s299 = sand.u32 %s34, 1
        %s300 = scalar_lea.sflag [#allocation3], %s299
        %s301 = sand.u32 %s34, 1
        %s302 = smul.addr %s301, 16
        %s303 = scalar_lea.vmem [#allocation2], %s302
        %p304 = pneg %p47
        %p305 = pneg %p44
        %p306 = pneg %p68
        %p307 = pneg %p65
        %p308 = pneg %p89
        %p309 = pneg %p86
        %p310 = pneg %p115
        %p311 = pneg %p112
        %s312 = smul.u32 2, %s26
        %p313 = scmp.lt.s32.totalorder %s312, 3
        %s314 = scalar_select %p313, %s312, 3
        %s315 = smul.addr %s314, 8
        %s316 = scalar_lea.vmem %s3, %s315
        %p317 = pneg %p141
        %p318 = pneg %p138
        %s319 = smul.u32 2, %s26
        %p320 = scmp.lt.s32.totalorder %s319, 3
        %s321 = scalar_select %p320, %s319, 3
        %s322 = smul.addr %s321, 8
        %s323 = scalar_lea.vmem %s4, %s322
        %p324 = pneg %p167
        %p325 = pneg %p164
        %s326 = smul.u32 2, %s26
        %p327 = scmp.lt.s32.totalorder %s326, 3
        %s328 = scalar_select %p327, %s326, 3
        %s329 = smul.addr %s328, 8
        %s330 = scalar_lea.vmem %s5, %s329
        %p331 = pneg %p193
        %p332 = pneg %p190
        %s333 = sand.u32 %s180, 1
        %s334 = scalar_lea.sflag [#allocation4], %s333
        %s335 = sand.u32 %s180, 1
        %s336 = smul.addr %s335, 16
        %s337 = scalar_lea.vmem [#allocation7], %s336
        %p338 = pneg %p219
        %p339 = pneg %p216
        %s340 = smul.u32 2, %s26
        %p341 = scmp.lt.s32.totalorder %s340, 3
        %s342 = scalar_select %p341, %s340, 3
        %s343 = smul.addr %s342, 8
        %s344 = scalar_lea.vmem %s7, %s343
        %s345 = smul.u32 2, %s26
        %s346 = smul.u32 2, %s26
        %p347 = scmp.lt.s32.totalorder %s346, 3
        %s348 = scalar_select %p347, %s346, 3
        %s349 = smul.addr %s348, 8
        %s350 = scalar_lea.vmem %s3, %s349
        %s351 = smul.u32 2, %s26
        %s352 = smul.u32 2, %s26
        %p353 = scmp.lt.s32.totalorder %s352, 3
        %s354 = scalar_select %p353, %s352, 3
        %s355 = smul.addr %s354, 8
        %s356 = scalar_lea.vmem %s4, %s355
        %s357 = smul.u32 2, %s26
        %s358 = smul.u32 2, %s26
        %p359 = scmp.lt.s32.totalorder %s358, 3
        %s360 = scalar_select %p359, %s358, 3
        %s361 = smul.addr %s360, 8
        %s362 = scalar_lea.vmem %s5, %s361
        %s363 = smul.u32 2, %s26
        %s364 = smul.u32 2, %s26
        %s365 = smul.u32 2, %s26
        %p366 = scmp.lt.s32.totalorder %s365, 3
        %s367 = scalar_select %p366, %s365, 3
        %s368 = smul.addr %s367, 8
        %s369 = scalar_lea.vmem %s7, %s368
        %s370 = smul.u32 2, %s26
        %v371 = vld [vmem:[%s288] sm:$0xff]
        %v372 = vld [vmem:[%s288 + $0x8] sm:$0xff]
        %v373 = vld [vmem:[#allocation5] sm:$0xff]
        %v374 = vld [vmem:[#allocation5 + $0x28] sm:$0xff]
        %v375 = vld [vmem:[#allocation5 + $0x50] sm:$0xff]
        %v376 = vld [vmem:[#allocation5 + $0x78] sm:$0xff]
        %v377 = vld [vmem:[#allocation5 + $0xa0] sm:$0xff]
        %v378 = vld [vmem:[#allocation5 + $0xc8] sm:$0xff]
        %v379 = vld [vmem:[#allocation5 + $0xf0] sm:$0xff]
        %v380 = vld [vmem:[#allocation5 + $0x118] sm:$0xff]
        %v381 = vld [vmem:[#allocation5 + $0x140] sm:$0xff]
        %v382 = vld [vmem:[#allocation5 + $0x168] sm:$0xff]
        %v383 = vld [vmem:[#allocation5 + $0x190] sm:$0xff]
        %v384 = vld [vmem:[#allocation5 + $0x1b8] sm:$0xff]
        %v385 = vld [vmem:[#allocation5 + $0x1e0] sm:$0xff]
        %v386 = vld [vmem:[#allocation5 + $0x208] sm:$0xff]
        %v387 = vld [vmem:[#allocation5 + $0x230] sm:$0xff]
        %v388 = vld [vmem:[#allocation5 + $0x258] sm:$0xff]
        %389 = vmatpush.msra.mxu0 %v388
        %390 = vmatpush.msra.mxu0 %v387
        %391 = vmatpush.msra.mxu0 %v386
        %392 = vmatpush.msra.mxu0 %v385
        %393 = vmatpush.msra.mxu0 %v384
        %394 = vmatpush.msra.mxu0 %v383
        %395 = vmatpush.msra.mxu0 %v382
        %396 = vmatpush.msra.mxu0 %v381
        %397 = vmatpush.msra.mxu0 %v380
        %398 = vmatpush.msra.mxu0 %v379
        %399 = vmatpush.msra.mxu0 %v378
        %400 = vmatpush.msra.mxu0 %v377
        %401 = vmatpush.msra.mxu0 %v376
        %402 = vmatpush.msra.mxu0 %v375
        %403 = vmatpush.msra.mxu0 %v374
        %404 = vmatpush.msra.mxu0 %v373
        %405 = vmatmul.f32.gmra.mxu0 %v371
        %v406 = vpop.f32.mrf.mxu0
        %v407 = vadd.f32 0.0, %v406
        %408 = vmatmul.f32.gmra.mxu0 %v372
        %v409 = vpop.f32.mrf.mxu0
        %v410 = vadd.f32 0.0, %v409
        %411 = vdwg.mxu0
        %412 = vst [vmem:[%s350] sm:$0xff] %v407
        %413 = vst [vmem:[%s350 + $0x8] sm:$0xff] %v410
        %v414 = vld [vmem:[#allocation5 + $0x8] sm:$0xff]
        %v415 = vld [vmem:[#allocation5 + $0x30] sm:$0xff]
        %v416 = vld [vmem:[#allocation5 + $0x58] sm:$0xff]
        %v417 = vld [vmem:[#allocation5 + $0x80] sm:$0xff]
        %v418 = vld [vmem:[#allocation5 + $0xa8] sm:$0xff]
        %v419 = vld [vmem:[#allocation5 + $0xd0] sm:$0xff]
        %v420 = vld [vmem:[#allocation5 + $0xf8] sm:$0xff]
        %v421 = vld [vmem:[#allocation5 + $0x120] sm:$0xff]
        %v422 = vld [vmem:[#allocation5 + $0x148] sm:$0xff]
        %v423 = vld [vmem:[#allocation5 + $0x170] sm:$0xff]
        %v424 = vld [vmem:[#allocation5 + $0x198] sm:$0xff]
        %v425 = vld [vmem:[#allocation5 + $0x1c0] sm:$0xff]
        %v426 = vld [vmem:[#allocation5 + $0x1e8] sm:$0xff]
        %v427 = vld [vmem:[#allocation5 + $0x210] sm:$0xff]
        %v428 = vld [vmem:[#allocation5 + $0x238] sm:$0xff]
        %v429 = vld [vmem:[#allocation5 + $0x260] sm:$0xff]
        %430 = vmatpush.msra.mxu0 %v429
        %431 = vmatpush.msra.mxu0 %v428
        %432 = vmatpush.msra.mxu0 %v427
        %433 = vmatpush.msra.mxu0 %v426
        %434 = vmatpush.msra.mxu0 %v425
        %435 = vmatpush.msra.mxu0 %v424
        %436 = vmatpush.msra.mxu0 %v423
        %437 = vmatpush.msra.mxu0 %v422
        %438 = vmatpush.msra.mxu0 %v421
        %439 = vmatpush.msra.mxu0 %v420
        %440 = vmatpush.msra.mxu0 %v419
        %441 = vmatpush.msra.mxu0 %v418
        %442 = vmatpush.msra.mxu0 %v417
        %443 = vmatpush.msra.mxu0 %v416
        %444 = vmatpush.msra.mxu0 %v415
        %445 = vmatpush.msra.mxu0 %v414
        %446 = vmatmul.f32.gmra.mxu0 %v371
        %v447 = vpop.f32.mrf.mxu0
        %v448 = vadd.f32 0.0, %v447
        %449 = vmatmul.f32.gmra.mxu0 %v372
        %v450 = vpop.f32.mrf.mxu0
        %v451 = vadd.f32 0.0, %v450
        %452 = vdwg.mxu0
        %453 = vst [vmem:[%s356] sm:$0xff] %v448
        %454 = vst [vmem:[%s356 + $0x8] sm:$0xff] %v451
        %v455 = vld [vmem:[#allocation5 + $0x10] sm:$0xff]
        %v456 = vld [vmem:[#allocation5 + $0x38] sm:$0xff]
        %v457 = vld [vmem:[#allocation5 + $0x60] sm:$0xff]
        %v458 = vld [vmem:[#allocation5 + $0x88] sm:$0xff]
        %v459 = vld [vmem:[#allocation5 + $0xb0] sm:$0xff]
        %v460 = vld [vmem:[#allocation5 + $0xd8] sm:$0xff]
        %v461 = vld [vmem:[#allocation5 + $0x100] sm:$0xff]
        %v462 = vld [vmem:[#allocation5 + $0x128] sm:$0xff]
        %v463 = vld [vmem:[#allocation5 + $0x150] sm:$0xff]
        %v464 = vld [vmem:[#allocation5 + $0x178] sm:$0xff]
        %v465 = vld [vmem:[#allocation5 + $0x1a0] sm:$0xff]
        %v466 = vld [vmem:[#allocation5 + $0x1c8] sm:$0xff]
        %v467 = vld [vmem:[#allocation5 + $0x1f0] sm:$0xff]
        %v468 = vld [vmem:[#allocation5 + $0x218] sm:$0xff]
        %v469 = vld [vmem:[#allocation5 + $0x240] sm:$0xff]
        %v470 = vld [vmem:[#allocation5 + $0x268] sm:$0xff]
        %471 = vmatpush.msra.mxu0 %v470
        %472 = vmatpush.msra.mxu0 %v469
        %473 = vmatpush.msra.mxu0 %v468
        %474 = vmatpush.msra.mxu0 %v467
        %475 = vmatpush.msra.mxu0 %v466
        %476 = vmatpush.msra.mxu0 %v465
        %477 = vmatpush.msra.mxu0 %v464
        %478 = vmatpush.msra.mxu0 %v463
        %479 = vmatpush.msra.mxu0 %v462
        %480 = vmatpush.msra.mxu0 %v461
        %481 = vmatpush.msra.mxu0 %v460
        %482 = vmatpush.msra.mxu0 %v459
        %483 = vmatpush.msra.mxu0 %v458
        %484 = vmatpush.msra.mxu0 %v457
        %485 = vmatpush.msra.mxu0 %v456
        %486 = vmatpush.msra.mxu0 %v455
        %487 = vmatmul.f32.gmra.mxu0 %v371
        %v488 = vpop.f32.mrf.mxu0
        %v489 = vadd.f32 0.0, %v488
        %490 = vmatmul.f32.gmra.mxu0 %v372
        %v491 = vpop.f32.mrf.mxu0
        %v492 = vadd.f32 0.0, %v491
        %493 = vdwg.mxu0
        %494 = vst [vmem:[%s362] sm:$0xff] %v489
        %495 = vst [vmem:[%s362 + $0x8] sm:$0xff] %v492
        %v496 = vld [vmem:[#allocation5 + $0x18] sm:$0xff]
        %v497 = vld [vmem:[#allocation5 + $0x40] sm:$0xff]
        %v498 = vld [vmem:[#allocation5 + $0x68] sm:$0xff]
        %v499 = vld [vmem:[#allocation5 + $0x90] sm:$0xff]
        %v500 = vld [vmem:[#allocation5 + $0xb8] sm:$0xff]
        %v501 = vld [vmem:[#allocation5 + $0xe0] sm:$0xff]
        %v502 = vld [vmem:[#allocation5 + $0x108] sm:$0xff]
        %v503 = vld [vmem:[#allocation5 + $0x130] sm:$0xff]
        %v504 = vld [vmem:[#allocation5 + $0x158] sm:$0xff]
        %v505 = vld [vmem:[#allocation5 + $0x180] sm:$0xff]
        %v506 = vld [vmem:[#allocation5 + $0x1a8] sm:$0xff]
        %v507 = vld [vmem:[#allocation5 + $0x1d0] sm:$0xff]
        %v508 = vld [vmem:[#allocation5 + $0x1f8] sm:$0xff]
        %v509 = vld [vmem:[#allocation5 + $0x220] sm:$0xff]
        %v510 = vld [vmem:[#allocation5 + $0x248] sm:$0xff]
        %v511 = vld [vmem:[#allocation5 + $0x270] sm:$0xff]
        %512 = vmatpush.msra.mxu0 %v511
        %513 = vmatpush.msra.mxu0 %v510
        %514 = vmatpush.msra.mxu0 %v509
        %515 = vmatpush.msra.mxu0 %v508
        %516 = vmatpush.msra.mxu0 %v507
        %517 = vmatpush.msra.mxu0 %v506
        %518 = vmatpush.msra.mxu0 %v505
        %519 = vmatpush.msra.mxu0 %v504
        %520 = vmatpush.msra.mxu0 %v503
        %521 = vmatpush.msra.mxu0 %v502
        %522 = vmatpush.msra.mxu0 %v501
        %523 = vmatpush.msra.mxu0 %v500
        %524 = vmatpush.msra.mxu0 %v499
        %525 = vmatpush.msra.mxu0 %v498
        %526 = vmatpush.msra.mxu0 %v497
        %527 = vmatpush.msra.mxu0 %v496
        %528 = vmatmul.f32.gmra.mxu0 %v371
        %v529 = vpop.f32.mrf.mxu0
        %v530 = vadd.f32 0.0, %v529
        %531 = vmatmul.f32.gmra.mxu0 %v372
        %v532 = vpop.f32.mrf.mxu0
        %v533 = vadd.f32 0.0, %v532
        %534 = vdwg.mxu0
        %535 = vst [vmem:[%s337] sm:$0xff] %v530
        %536 = vst [vmem:[%s337 + $0x8] sm:$0xff] %v533
        %v537 = vld [vmem:[#allocation5 + $0x20] sm:$0xff]
        %v538 = vld [vmem:[#allocation5 + $0x48] sm:$0xff]
        %v539 = vld [vmem:[#allocation5 + $0x70] sm:$0xff]
        %v540 = vld [vmem:[#allocation5 + $0x98] sm:$0xff]
        %v541 = vld [vmem:[#allocation5 + $0xc0] sm:$0xff]
        %v542 = vld [vmem:[#allocation5 + $0xe8] sm:$0xff]
        %v543 = vld [vmem:[#allocation5 + $0x110] sm:$0xff]
        %v544 = vld [vmem:[#allocation5 + $0x138] sm:$0xff]
        %v545 = vld [vmem:[#allocation5 + $0x160] sm:$0xff]
        %v546 = vld [vmem:[#allocation5 + $0x188] sm:$0xff]
        %v547 = vld [vmem:[#allocation5 + $0x1b0] sm:$0xff]
        %v548 = vld [vmem:[#allocation5 + $0x1d8] sm:$0xff]
        %v549 = vld [vmem:[#allocation5 + $0x200] sm:$0xff]
        %v550 = vld [vmem:[#allocation5 + $0x228] sm:$0xff]
        %v551 = vld [vmem:[#allocation5 + $0x250] sm:$0xff]
        %v552 = vld [vmem:[#allocation5 + $0x278] sm:$0xff]
        %v553 = vld [vmem:[%s2] sm:$0x1]
        %v555 = vperm.slane %v553, 0
        %557 = vmatpush.msra.mxu0 %v552
        %558 = vmatpush.msra.mxu0 %v551
        %559 = vmatpush.msra.mxu0 %v550
        %560 = vmatpush.msra.mxu0 %v549
        %561 = vmatpush.msra.mxu0 %v548
        %562 = vmatpush.msra.mxu0 %v547
        %563 = vmatpush.msra.mxu0 %v546
        %564 = vmatpush.msra.mxu0 %v545
        %565 = vmatpush.msra.mxu0 %v544
        %566 = vmatpush.msra.mxu0 %v543
        %567 = vmatpush.msra.mxu0 %v542
        %568 = vmatpush.msra.mxu0 %v541
        %569 = vmatpush.msra.mxu0 %v540
        %570 = vmatpush.msra.mxu0 %v539
        %571 = vmatpush.msra.mxu0 %v538
        %572 = vmatpush.msra.mxu0 %v537
        %573 = vmatmul.f32.gmra.mxu0 %v371
        %v574 = vpop.f32.mrf.mxu0
        %v575 = vadd.f32 %v555, %v574
        %576 = vmatmul.f32.gmra.mxu0 %v372
        %v577 = vpop.f32.mrf.mxu0
        %v578 = vadd.f32 %v555, %v577
        %579 = vdwg.mxu0
        %v580 = vxor.u32 %v575, 2147483648
        %v581 = vxor.u32 %v578, 2147483648
        %v582 = vmul.f32 %v580, 1.442695
        %v583 = vpow.pop %v582
        %v584 = vmul.f32 %v581, 1.442695
        %v585 = vpow.pop %v584
        %v586 = vadd.f32 %v583, 1.0
        %v587 = vadd.f32 %v585, 1.0
        %v588 = vrcp.pop %v586
        %v589 = vmul.f32 %v586, %v588
        %v590 = vsub.f32 1.0, %v589
        %v591 = vmul.f32 %v588, %v590
        %v592 = vadd.f32 %v588, %v591
        %vm593 = vweird.f32 %v586
        %vm594 = vweird.f32 %v588
        %vm595 = vmor %vm593, %vm594
        %v596 = vsel %vm595, %v588, %v592
        %v597 = vand.u32 2147483647, %v586
        %vm598 = vcmp.eq.f32.partialorder %v597, 8.507059e+37
        %v599 = vand.u32 %v586, 2147483648
        %v600 = vor.u32 1.1754944e-38, %v599
        %v601 = vsel %vm598, %v600, %v596
        %v602 = vmul.f32 1.0, %v601
        %v603 = vrcp.pop %v587
        %v604 = vmul.f32 %v587, %v603
        %v605 = vsub.f32 1.0, %v604
        %v606 = vmul.f32 %v603, %v605
        %v607 = vadd.f32 %v603, %v606
        %vm608 = vweird.f32 %v587
        %vm609 = vweird.f32 %v603
        %vm610 = vmor %vm608, %vm609
        %v611 = vsel %vm610, %v603, %v607
        %v612 = vand.u32 2147483647, %v587
        %vm613 = vcmp.eq.f32.partialorder %v612, 8.507059e+37
        %v614 = vand.u32 %v587, 2147483648
        %v615 = vor.u32 1.1754944e-38, %v614
        %v616 = vsel %vm613, %v615, %v611
        %v617 = vmul.f32 1.0, %v616
        %v618 = vmul.f32 %v602, 0.03125
        %v619 = vmul.f32 %v617, 0.03125
        %620 = vst [vmem:[%s369] sm:$0xff] %v618
        %621 = vst [vmem:[%s369 + $0x8] sm:$0xff] %v619
        %s622 = smul.u32 2, %s26
        %p623 = scmp.lt.s32.totalorder %s622, 3
        %s624 = scalar_select %p623, %s622, 3
        %s625 = smul.addr %s624, 8
        %s626 = scalar_lea.vmem %s3, %s625
        %s627 = smul.u32 2, %s26
        %p628 = scmp.lt.s32.totalorder %s627, 3
        %s629 = scalar_select %p628, %s627, 3
        %s630 = smul.addr %s629, 8
        %s631 = scalar_lea.vmem %s4, %s630
        %s632 = smul.u32 2, %s26
        %p633 = scmp.lt.s32.totalorder %s632, 3
        %s634 = scalar_select %p633, %s632, 3
        %s635 = smul.addr %s634, 8
        %s636 = scalar_lea.vmem %s5, %s635
        %s637 = sand.u32 %s180, 1
        %s638 = scalar_lea.sflag [#allocation4], %s637
        %s639 = sand.u32 %s180, 1
        %s640 = smul.addr %s639, 16
        %s641 = scalar_lea.vmem [#allocation7], %s640
        %s642 = smul.u32 2, %s26
        %p643 = scmp.lt.s32.totalorder %s642, 3
        %s644 = scalar_select %p643, %s642, 3
        %s645 = smul.addr %s644, 8
        %s646 = scalar_lea.vmem %s7, %s645
        // Predicated region
        $region41: #{ttt_base_forward.1} parent=31 // pred_check
          %p647 = pneg %p112
        $region42: #{ttt_base_forward.1} parent=31 // pred_check_branch
          %649 = sbr.rel (%p647) target = $region44
        $region43: #{ttt_base_forward.1} parent=31 // pred_region
          %s650 = smul.u32 2, %s26
        $region44: #{ttt_base_forward.1} parent=31 // pred_fallthru
          _
        // Predicated region
        $region45: #{ttt_base_forward.1} parent=31 // pred_check
          %p651 = pneg %p138
        $region46: #{ttt_base_forward.1} parent=31 // pred_check_branch
          %653 = sbr.rel (%p651) target = $region48
        $region47: #{ttt_base_forward.1} parent=31 // pred_region
          %s654 = smul.u32 2, %s26
        $region48: #{ttt_base_forward.1} parent=31 // pred_fallthru
          _
        // Predicated region
        $region49: #{ttt_base_forward.1} parent=31 // pred_check
          %p655 = pneg %p164
        $region50: #{ttt_base_forward.1} parent=31 // pred_check_branch
          %657 = sbr.rel (%p655) target = $region52
        $region51: #{ttt_base_forward.1} parent=31 // pred_region
          %s658 = smul.u32 2, %s26
        $region52: #{ttt_base_forward.1} parent=31 // pred_fallthru
          _
        // Predicated region
        $region53: #{ttt_base_forward.1} parent=31 // pred_check
          %p659 = pneg %p190
        $region54: #{ttt_base_forward.1} parent=31 // pred_check_branch
          %661 = sbr.rel (%p659) target = $region56
        $region55: #{ttt_base_forward.1} parent=31 // pred_region
          %s662 = smul.u32 2, %s26
          %664 = vsyncadd %s638, 0
          %s665 = smul.addr %s662, 8
          %s666 = scalar_lea.hbm %s6, %s665
          %s667 = sshll.u32 %s641, 4
          %s668 = int_to_ptr.vmem [resolvable:$true] %s667
          %s669 = sshll.u32 %s666, 4
          %s670 = int_to_ptr.hbm [resolvable:$true] %s669
          %675 = dma.vmem_to_hbm [thread:$0]  %s668, 256, %s670, %s638, 128, 128, 8
        $region56: #{ttt_base_forward.1} parent=31 // pred_fallthru
          _
        // Predicated region
        $region57: #{ttt_base_forward.1} parent=31 // pred_check
          %p676 = pneg %p216
        $region58: #{ttt_base_forward.1} parent=31 // pred_check_branch
          %678 = sbr.rel (%p676) target = $region60
        $region59: #{ttt_base_forward.1} parent=31 // pred_region
          %s679 = smul.u32 2, %s26
        $region60: #{ttt_base_forward.1} parent=31 // pred_fallthru
          _
      $region32: #{ttt_base_forward.1} parent=5 // pred_fallthru
        _
      %p680 = scmp.le.s32.totalorder 2, %s21
      // Predicated region
      $region61: #{ttt_base_forward.1} parent=5 // pred_check
        %p681 = pneg %p680
      $region62: #{ttt_base_forward.1} parent=5 // pred_check_branch
        %683 = sbr.rel (%p681) target = $region64
      $region63: #{ttt_base_forward.1} parent=5 // pred_region
        %s684 = ssub.s32 %s21, 2
        // Predicated region
        $region65: #{ttt_base_forward.1} parent=63 // pred_check
          %p685 = pneg %p118
        $region66: #{ttt_base_forward.1} parent=63 // pred_check_branch
          %687 = sbr.rel (%p685) target = $region68
        $region67: #{ttt_base_forward.1} parent=63 // pred_region
          %s688 = smul.u32 2, %s27
          %p689 = scmp.lt.s32.totalorder %s688, 3
          %s690 = scalar_select %p689, %s688, 3
          %s691 = smul.addr %s690, 8
          %s692 = scalar_lea.vmem %s3, %s691
        $region68: #{ttt_base_forward.1} parent=63 // pred_fallthru
          _
        // Predicated region
        $region69: #{ttt_base_forward.1} parent=63 // pred_check
          %p693 = pneg %p144
        $region70: #{ttt_base_forward.1} parent=63 // pred_check_branch
          %695 = sbr.rel (%p693) target = $region72
        $region71: #{ttt_base_forward.1} parent=63 // pred_region
          %s696 = smul.u32 2, %s27
          %p697 = scmp.lt.s32.totalorder %s696, 3
          %s698 = scalar_select %p697, %s696, 3
          %s699 = smul.addr %s698, 8
          %s700 = scalar_lea.vmem %s4, %s699
        $region72: #{ttt_base_forward.1} parent=63 // pred_fallthru
          _
        // Predicated region
        $region73: #{ttt_base_forward.1} parent=63 // pred_check
          %p701 = pneg %p170
        $region74: #{ttt_base_forward.1} parent=63 // pred_check_branch
          %703 = sbr.rel (%p701) target = $region76
        $region75: #{ttt_base_forward.1} parent=63 // pred_region
          %s704 = smul.u32 2, %s27
          %p705 = scmp.lt.s32.totalorder %s704, 3
          %s706 = scalar_select %p705, %s704, 3
          %s707 = smul.addr %s706, 8
          %s708 = scalar_lea.vmem %s5, %s707
        $region76: #{ttt_base_forward.1} parent=63 // pred_fallthru
          _
        // Predicated region
        $region77: #{ttt_base_forward.1} parent=63 // pred_check
          %p709 = pneg %p196
        $region78: #{ttt_base_forward.1} parent=63 // pred_check_branch
          %711 = sbr.rel (%p709) target = $region80
        $region79: #{ttt_base_forward.1} parent=63 // pred_region
          %s712 = sand.u32 %s181, 1
          %s713 = scalar_lea.sflag [#allocation4], %s712
          %s714 = sand.u32 %s181, 1
          %s715 = smul.addr %s714, 16
          %s716 = scalar_lea.vmem [#allocation7], %s715
          %718 = dma.done %s713, 256
        $region80: #{ttt_base_forward.1} parent=63 // pred_fallthru
          _
        // Predicated region
        $region81: #{ttt_base_forward.1} parent=63 // pred_check
          %p719 = pneg %p222
        $region82: #{ttt_base_forward.1} parent=63 // pred_check_branch
          %721 = sbr.rel (%p719) target = $region84
        $region83: #{ttt_base_forward.1} parent=63 // pred_region
          %s722 = smul.u32 2, %s27
          %p723 = scmp.lt.s32.totalorder %s722, 3
          %s724 = scalar_select %p723, %s722, 3
          %s725 = smul.addr %s724, 8
          %s726 = scalar_lea.vmem %s7, %s725
        $region84: #{ttt_base_forward.1} parent=63 // pred_fallthru
          _
      $region64: #{ttt_base_forward.1} parent=5 // pred_fallthru
        _
    $region6: #{ttt_base_forward.1} parent=1 // loop_footer
      %s25 = sadd.s32 1, %s21
    $region7: #{ttt_base_forward.1} parent=1 // loop_footer_branch
      %20 = sbr.rel target = $region3
    $region8: #{ttt_base_forward.1} parent=1 // loop_exit
      _
    %727 = vsyncpa [#allocation3], 1
    %s728 = scalar_lea.sflag [#allocation3], 1
    %729 = vsyncpa %s728, 1
    %730 = vsyncpa [#allocation6], 1
    %731 = vsyncpa [#allocation4], 1
    %s732 = scalar_lea.sflag [#allocation4], 1
    %733 = vsyncpa %s732, 1

</llo_original>
